<compile_context>
chip_gen: v7x
topology: tpu7x:2x2x1
jax: 0.10.0
libtpu: 0.0.40
codegen_flags: <defaults>
</compile_context>

<pallas_src>
import functools
import math

import numpy as np
import jax
import jax.numpy as jnp
from jax import lax
from jax.experimental import pallas as pl
from jax.experimental.pallas import tpu as pltpu


def _cdiv(a, b):
    return -(-a // b)


def _round_up(v, m):
    return _cdiv(v, m) * m


def _round_down(v, m):
    return (v // m) * m


def _chip_defaults():
    """(per-step HBM byte target, min grid steps, VMEM ceiling) per generation."""
    kind = ""
    try:
        kind = jax.devices()[0].device_kind.lower()
    except Exception:
        pass
    if "v7" in kind:                          # 2 TCs, 64 MiB VMEM/TC, ~3.2 TB/s
        return 4 << 20, 4, 48 << 20
    if "v5 lite" in kind or "v5e" in kind:    # 1 TC, 128 MiB VMEM, ~0.82 TB/s
        return (3 << 20) // 2, 2, 100 << 20
    if "v6" in kind:                          # 1 TC, 128 MiB VMEM, ~1.4 TB/s
        return 2 << 20, 2, 100 << 20
    return 2 << 20, 4, 48 << 20               # unknown: conservative


def _adapter_kernel(x_ref, w1_ref, w2_ref, o_ref, *, sub_rows, n_sub):
    """One row tile (lane-dense packed): out = relu(x @ W1) @ W2 + x.

    The tile is processed in `n_sub` sub-blocks of `sub_rows` packed rows so the
    f32 temporaries (x_f32, h, y) stay small regardless of the DMA tile size.
    """
    w1 = w1_ref[...]
    w2 = w2_ref[...]

    def body(s, carry):
        r0 = pl.multiple_of(s * sub_rows, sub_rows)
        x = x_ref[pl.ds(r0, sub_rows), :]                # io dtype
        x_f32 = x.astype(jnp.float32)                    # exact residual
        h = jnp.dot(x.astype(w1.dtype), w1,
                    preferred_element_type=jnp.float32)  # MXU, f32 acc
        h = jnp.maximum(h, 0.0)                          # ReLU on VPU
        y = jnp.dot(h.astype(w2.dtype), w2,
                    preferred_element_type=jnp.float32)  # MXU, f32 acc
        o_ref[pl.ds(r0, sub_rows), :] = (y + x_f32).astype(o_ref.dtype)
        return carry

    if n_sub == 1:
        body(0, 0)
    else:
        lax.fori_loop(0, n_sub, body, 0, unroll=False)


def feedforward_adapter(x, adjust_tensor, w2, *, hid_siz_per=0.5,
                        compute_dtype=jnp.float32, donate_x=False):
    """x: (..., E). adjust_tensor: (a0, a1). w2: (H, E). Returns (..., E) in x.dtype."""
    orig_dtype = x.dtype
    E = x.shape[-1]
    H = max(1, int(round(E * hid_siz_per)))
    a0, a1 = adjust_tensor.shape
    assert w2.shape == (H, E), f"w2 must be ({H}, {E}), got {w2.shape}"

    # W1 = eye(E, a0) @ A @ eye(a1, H): only the top-left min(E,a0) x min(H,a1)
    # block is A; everything else is zero. Built directly (no eye matmuls).
    r, c = min(E, a0), min(H, a1)
    w1 = jnp.zeros((E, H), jnp.float32).at[:r, :c].set(
        adjust_tensor[:r, :c].astype(jnp.float32))
    w2f = w2.astype(jnp.float32)

    # Lane-dense packing: fold P rows into one row of P*E lanes (a multiple of
    # 128) so all HBM loads/stores are unmasked full-lane vregs. Weights become
    # block-diagonal (kron).
    P = 1
    if E < 128:
        P = math.lcm(E, 128) // E
        if P * E > 1024:                      # kron weights would get silly
            P = 128 // E if 128 % E == 0 else 1
    Ep, Hp = P * E, P * H
    if P > 1:
        eye_p = jnp.eye(P, dtype=jnp.float32)
        w1 = jnp.kron(eye_p, w1)              # (P*E, P*H), block-diagonal
        w2f = jnp.kron(eye_p, w2f)            # (P*H, P*E), block-diagonal
    w1 = w1.astype(compute_dtype)
    w2f = w2f.astype(compute_dtype)

    lead = x.shape[:-1]
    M = int(np.prod(lead)) if lead else 1
    x2 = x.reshape(M, E)                      # row-major dim merge: free

    # Only a < P-row tail (if any) needs padding for the packing reshape. The
    # ragged grid itself uses Pallas edge-block masking (no slab pad / slice).
    rem = M % P
    if rem:
        x2 = jnp.pad(x2, ((0, P - rem), (0, 0)))
    Mp = x2.shape[0] // P
    xp = x2.reshape(Mp, Ep)                   # free dim merge

    # ---- tile selection: per-step HBM byte target, VMEM + grid caps ---------
    SUBLANES = 8
    MAX_SUB_ROWS = 512                        # packed rows per in-kernel compute block
    step_bytes, min_grid, vmem_ceiling = _chip_defaults()

    in_b = jnp.dtype(orig_dtype).itemsize
    out_b = jnp.dtype(orig_dtype).itemsize
    cdt_b = jnp.dtype(compute_dtype).itemsize
    row_bytes = Ep * (in_b + out_b)           # x + out HBM traffic per packed row

    tm_p = _round_up(max(SUBLANES, step_bytes // row_bytes), SUBLANES)

    # VMEM footprint: double-buffered in+out tiles + f32 sub-block temporaries
    # (x_f32, h, y + the loaded x slice) + resident weights + headroom.
    weight_bytes = 2 * Ep * Hp * cdt_b
    temp_bytes = MAX_SUB_ROWS * ((2 * Ep + Hp) * 4 + Ep * max(in_b, cdt_b))
    fixed_bytes = weight_bytes + temp_bytes + (2 << 20)
    tile_budget = max(2 * SUBLANES * row_bytes,
                      (vmem_ceiling * 3) // 4 - fixed_bytes)
    tm_p = min(tm_p, max(SUBLANES,
                         _round_down(tile_budget // (2 * row_bytes), SUBLANES)))

    # Keep >= min_grid tiles when there is enough work (v7x megacore needs >=2,
    # ideally >=4; multiple steps also pipeline DMA/compute/writeback).
    if Mp > min_grid * SUBLANES:
        tm_p = min(tm_p, _round_up(_cdiv(Mp, min_grid), SUBLANES))
    tm_p = max(SUBLANES, min(tm_p, _round_up(Mp, SUBLANES)))

    # Decouple the DMA tile from the compute working set via in-kernel sub-blocks.
    if tm_p > MAX_SUB_ROWS:
        tm_p = _round_down(tm_p, MAX_SUB_ROWS)
        sub_rows = MAX_SUB_ROWS
    else:
        sub_rows = tm_p
    n_sub = tm_p // sub_rows
    num_tiles = _cdiv(Mp, tm_p)

    tile_io_bytes = 2 * tm_p * row_bytes
    vmem_limit = int(min(vmem_ceiling,
                         max(16 << 20, tile_io_bytes + fixed_bytes + (4 << 20))))

    cost = pl.CostEstimate(
        flops=int(4 * Mp * Ep * Hp),          # includes P-fold block-diag redundancy
        transcendentals=0,
        bytes_accessed=int(Mp * row_bytes + (w1.size + w2f.size) * cdt_b),
    )

    kernel = functools.partial(_adapter_kernel, sub_rows=sub_rows, n_sub=n_sub)

    # Alias the x slab with the output only when the caller donates x's buffer;
    # otherwise XLA would insert a full copy to keep x live (anti-win).
    io_aliases = {0: 0} if donate_x else {}

    out = pl.pallas_call(
        kernel,
        out_shape=jax.ShapeDtypeStruct((Mp, Ep), orig_dtype),
        grid=(num_tiles,),
        in_specs=[
            pl.BlockSpec((tm_p, Ep), lambda i: (i, 0)),   # x row tile (lane-dense)
            pl.BlockSpec((Ep, Hp), lambda i: (0, 0)),     # W1 packed, resident
            pl.BlockSpec((Hp, Ep), lambda i: (0, 0)),     # W2 packed, resident
        ],
        out_specs=pl.BlockSpec((tm_p, Ep), lambda i: (i, 0)),
        compiler_params=pltpu.CompilerParams(
            dimension_semantics=("parallel",),            # megacore on v7x
            vmem_limit_bytes=vmem_limit,
        ),
        cost_estimate=cost,
        input_output_aliases=io_aliases,
    )(xp, w1, w2f)

    out = out.reshape(Mp * P, E)
    if rem:
        out = out[:M]                         # only the tiny padded-tail case
    return out.reshape(*lead, E)


def reference(x, adjust_tensor, w2, *, hid_siz_per=0.5):
    """Pure-JAX f32 reference (mirrors the PyTorch forward)."""
    E = x.shape[-1]
    H = max(1, int(round(E * hid_siz_per)))
    a0, a1 = adjust_tensor.shape
    w1 = jnp.eye(E, a0) @ adjust_tensor.astype(jnp.float32) @ jnp.eye(a1, H)
    net = jnp.maximum(x @ w1, 0.0)
    return net @ w2 + x


if __name__ == "__main__":
    init_scale = 0.001
    adj_size = (10, 10)
    hid_siz_per = 0.5

    key = jax.random.PRNGKey(0)
    k_adj, k_w2, k_x1, k_x2, k_x3 = jax.random.split(key, 5)

    E = 32
    H = max(1, int(round(E * hid_siz_per)))

    adjust_tensor = init_scale * jax.random.normal(k_adj, adj_size, dtype=jnp.float32)
    # TODO(synk): PyTorch re-draws W2 from N(0, 0.001) on every forward; here it
    # is drawn once deterministically and passed in.
    w2 = init_scale * jax.random.normal(k_w2, (H, E), dtype=jnp.float32)

    # -- check 1: small input (partial single block), f32 compute, strict tol --
    x_small = jax.random.normal(k_x1, (2, 8, E), dtype=jnp.float32)
    out1 = jax.block_until_ready(
        feedforward_adapter(x_small, adjust_tensor, w2, hid_siz_per=hid_siz_per))
    ref1 = reference(x_small, adjust_tensor, w2, hid_siz_per=hid_siz_per)
    np.testing.assert_allclose(np.asarray(out1), np.asarray(ref1),
                               rtol=1e-5, atol=1e-5)
    assert out1.shape == x_small.shape and out1.dtype == x_small.dtype

    # -- check 2: larger ragged M (multi-tile grid with edge-masked last block) --
    x_big = jax.random.normal(k_x2, (3, 500, E), dtype=jnp.float32)   # M = 1500
    out2 = jax.block_until_ready(
        feedforward_adapter(x_big, adjust_tensor, w2, hid_siz_per=hid_siz_per))
    ref2 = reference(x_big, adjust_tensor, w2, hid_siz_per=hid_siz_per)
    np.testing.assert_allclose(np.asarray(out2), np.asarray(ref2),
                               rtol=1e-5, atol=1e-5)
    assert out2.shape == x_big.shape and out2.dtype == x_big.dtype

    # -- check 3: M not divisible by the packing factor + bf16 weight path -----
    x_odd = jax.random.normal(k_x3, (1, 333, E), dtype=jnp.float32)   # 333 % 4 != 0
    out3 = jax.block_until_ready(
        feedforward_adapter(x_odd, adjust_tensor, w2, hid_siz_per=hid_siz_per,
                            compute_dtype=jnp.bfloat16))
    ref3 = reference(x_odd, adjust_tensor, w2, hid_siz_per=hid_siz_per)
    # Residual is exact f32; only the (tiny, ~2e-5 magnitude) adapter branch is
    # bf16-rounded, so a tight tolerance still holds.
    np.testing.assert_allclose(np.asarray(out3), np.asarray(ref3),
                               rtol=1e-4, atol=1e-4)
    assert out3.shape == x_odd.shape and out3.dtype == x_odd.dtype

    print("KERNEL_OK")
</pallas_src>

<mosaic_0001>
module attributes {stable_mosaic.version = 11 : i64} {
  func.func @_adapter_kernel(%arg0: i32, %arg1: memref<8x128xf32, #tpu.memory_space<vmem>>, %arg2: memref<128x64xf32, #tpu.memory_space<vmem>>, %arg3: memref<64x128xf32, #tpu.memory_space<vmem>>, %arg4: memref<8x128xf32, #tpu.memory_space<vmem>>) attributes {dimension_semantics = [#tpu.dimension_semantics<parallel>], iteration_bounds = array<i64: 1>, scalar_prefetch = 0 : i64, scratch_operands = 0 : i64, tpu.core_type = #tpu.core_type<tc>, window_params = [{transform_indices = @transform_0, window_bounds = array<i64: 8, 128>}, {pipeline_mode = #tpu.pipeline_mode<synchronous>, transform_indices = @transform_1, window_bounds = array<i64: 128, 64>}, {pipeline_mode = #tpu.pipeline_mode<synchronous>, transform_indices = @transform_2, window_bounds = array<i64: 64, 128>}, {transform_indices = @transform_3, window_bounds = array<i64: 8, 128>}]} {
    %c0 = arith.constant 0 : index
    %c0_0 = arith.constant 0 : index
    %0 = vector.load %arg2[%c0, %c0_0] : memref<128x64xf32, #tpu.memory_space<vmem>>, vector<128x64xf32>
    %c0_1 = arith.constant 0 : index
    %c0_2 = arith.constant 0 : index
    %1 = vector.load %arg3[%c0_1, %c0_2] : memref<64x128xf32, #tpu.memory_space<vmem>>, vector<64x128xf32>
    %c0_i32 = arith.constant 0 : i32
    %2 = tpu.assume_multiple %c0_i32, 8 : i32
    %3 = arith.index_cast %2 : i32 to index
    %c0_3 = arith.constant 0 : index
    %4 = vector.load %arg1[%3, %c0_3] : memref<8x128xf32, #tpu.memory_space<vmem>>, vector<8x128xf32>
    %cst = arith.constant dense<0.000000e+00> : vector<8x64xf32>
    %5 = tpu.matmul %4, %0, %cst {dimension_numbers = #tpu.dot_dimension_numbers<[1], [0], [0], [1], [0, 0, 1, 1], [], []>} : vector<8x128xf32>, vector<128x64xf32>, vector<8x64xf32> -> vector<8x64xf32>
    %cst_4 = arith.constant 0.000000e+00 : f32
    %6 = vector.broadcast %cst_4 : f32 to vector<8x64xf32>
    %7 = arith.maximumf %5, %6 : vector<8x64xf32>
    %cst_5 = arith.constant dense<0.000000e+00> : vector<8x128xf32>
    %8 = tpu.matmul %7, %1, %cst_5 {dimension_numbers = #tpu.dot_dimension_numbers<[1], [0], [0], [1], [0, 0, 1, 1], [], []>} : vector<8x64xf32>, vector<64x128xf32>, vector<8x128xf32> -> vector<8x128xf32>
    %9 = arith.addf %8, %4 : vector<8x128xf32>
    %10 = arith.index_cast %2 : i32 to index
    %c0_6 = arith.constant 0 : index
    %11 = vector.load %arg4[%10, %c0_6] : memref<8x128xf32, #tpu.memory_space<vmem>>, vector<8x128xf32>
    tpu.vector_store %arg4[%10, %c0_6], %9 {strides = array<i32>} : memref<8x128xf32, #tpu.memory_space<vmem>>, vector<8x128xf32>,
    return
  }
  func.func @transform_0(%arg0: i32) -> (i32, i32) {
    %c0_i32 = arith.constant 0 : i32
    %c0_i32_0 = arith.constant 0 : i32
    return %arg0, %c0_i32 : i32, i32
  }
  func.func @transform_1(%arg0: i32) -> (i32, i32) {
    %c0_i32 = arith.constant 0 : i32
    %c0_i32_0 = arith.constant 0 : i32
    %c0_i32_1 = arith.constant 0 : i32
    return %c0_i32, %c0_i32_0 : i32, i32
  }
  func.func @transform_2(%arg0: i32) -> (i32, i32) {
    %c0_i32 = arith.constant 0 : i32
    %c0_i32_0 = arith.constant 0 : i32
    %c0_i32_1 = arith.constant 0 : i32
    return %c0_i32, %c0_i32_0 : i32, i32
  }
  func.func @transform_3(%arg0: i32) -> (i32, i32) {
    %c0_i32 = arith.constant 0 : i32
    %c0_i32_0 = arith.constant 0 : i32
    return %arg0, %c0_i32 : i32, i32
  }
}

</mosaic_0001>

<llo_original>
// kernel: tpu_custom_call.1
$region0: #{tpu_custom_call.1}
  #allocation0 [shape = 'u32[]', space=smem, size = 0x4, offset = 0x4, fixed_abs, tag = 'smem constant byte address 0x4 - core index']
  #allocation1 [shape = 'u32[144,128]{1,0:T(1,128)}', space=vmem, size = 0x12000, scoped, tag = 'internal scratch']
  %s0 = inlined_call_operand.vmem [shape: f32[4,128], index: 0, kind: input, shape index: {}]
  %s1 = inlined_call_operand.vmem [shape: f32[128,64], index: 1, kind: input, shape index: {}]
  %s2 = inlined_call_operand.vmem [shape: f32[64,128], index: 2, kind: input, shape index: {}]
  %s3 = inlined_call_operand.hbm [shape: f32[4,128], index: 3, kind: output, shape index: {}]
  %s4 = sld [smem:[#allocation0]]
  $region22: #{tpu_custom_call.1} parent=0
    _
  %s6 = ssub.s32 1, %s4
  %s7 = scalar_select 0, %s6, %s4
  $region1: #{tpu_custom_call.1} parent=0
    #allocation2 [shape = 'u8[4096]{0}', space=vmem, size = 0x1000, scoped, tag = 'output window, operand 0, single buffered']
    #allocation3 [shape = 's32[1]{0}', space=sflag, size = 0x4, scoped, tag = 'scoped memory for tpu_custom_call.1']
    %8 = vsyncpa [#allocation3], 0
    // Predicated region
    $region2: #{tpu_custom_call.1} parent=1 // pred_check
      _
    $region3: #{tpu_custom_call.1} parent=1 // pred_check_branch
      %10 = sbr.rel (0) target = $region5
    $region4: #{tpu_custom_call.1} parent=1 // pred_region
      _
    $region5: #{tpu_custom_call.1} parent=1 // pred_fallthru
      _
    // Predicated region
    $region6: #{tpu_custom_call.1} parent=1 // pred_check
      _
    $region7: #{tpu_custom_call.1} parent=1 // pred_check_branch
      %12 = sbr.rel (0) target = $region9
    $region8: #{tpu_custom_call.1} parent=1 // pred_region
      _
    $region9: #{tpu_custom_call.1} parent=1 // pred_fallthru
      _
    // Predicated region
    $region10: #{tpu_custom_call.1} parent=1 // pred_check
      _
    $region11: #{tpu_custom_call.1} parent=1 // pred_check_branch
      %14 = sbr.rel (0) target = $region13
    $region12: #{tpu_custom_call.1} parent=1 // pred_region
      _
    $region13: #{tpu_custom_call.1} parent=1 // pred_fallthru
      _
    %v15 = vld [vmem:[%s1] sm:$0xff]
    %v16 = vld [vmem:[%s1 + $0x8] sm:$0xff]
    %v17 = vld [vmem:[%s1 + $0x10] sm:$0xff]
    %v18 = vld [vmem:[%s1 + $0x18] sm:$0xff]
    %v19 = vld [vmem:[%s1 + $0x20] sm:$0xff]
    %v20 = vld [vmem:[%s1 + $0x28] sm:$0xff]
    %v21 = vld [vmem:[%s1 + $0x30] sm:$0xff]
    %v22 = vld [vmem:[%s1 + $0x38] sm:$0xff]
    %v23 = vld [vmem:[%s1 + $0x40] sm:$0xff]
    %v24 = vld [vmem:[%s1 + $0x48] sm:$0xff]
    %v25 = vld [vmem:[%s1 + $0x50] sm:$0xff]
    %v26 = vld [vmem:[%s1 + $0x58] sm:$0xff]
    %v27 = vld [vmem:[%s1 + $0x60] sm:$0xff]
    %v28 = vld [vmem:[%s1 + $0x68] sm:$0xff]
    %v29 = vld [vmem:[%s1 + $0x70] sm:$0xff]
    %v30 = vld [vmem:[%s1 + $0x78] sm:$0xff]
    %v31 = vld [vmem:[%s2] sm:$0xff]
    %v32 = vld [vmem:[%s2 + $0x8] sm:$0xff]
    %v33 = vld [vmem:[%s2 + $0x10] sm:$0xff]
    %v34 = vld [vmem:[%s2 + $0x18] sm:$0xff]
    %v35 = vld [vmem:[%s2 + $0x20] sm:$0xff]
    %v36 = vld [vmem:[%s2 + $0x28] sm:$0xff]
    %v37 = vld [vmem:[%s2 + $0x30] sm:$0xff]
    %v38 = vld [vmem:[%s2 + $0x38] sm:$0xff]
    %v39 = vld [vmem:[%s0] sm:$0xff]
    %40 = vmatprep.subr.mxu0 0.0
    %41 = vmatpush1.msra.mxu0 %v15
    %42 = vmatprep.subr.mxu0 0.0
    %43 = vmatpush1.msra.mxu0 %v16
    %44 = vmatprep.subr.mxu0 0.0
    %45 = vmatpush1.msra.mxu0 %v17
    %46 = vmatprep.subr.mxu0 0.0
    %47 = vmatpush1.msra.mxu0 %v18
    %48 = vmatprep.subr.mxu0 0.0
    %49 = vmatpush1.msra.mxu0 %v19
    %50 = vmatprep.subr.mxu0 0.0
    %51 = vmatpush1.msra.mxu0 %v20
    %52 = vmatprep.subr.mxu0 0.0
    %53 = vmatpush1.msra.mxu0 %v21
    %54 = vmatprep.subr.mxu0 0.0
    %55 = vmatpush1.msra.mxu0 %v22
    %56 = vmatprep.subr.mxu0 0.0
    %57 = vmatpush1.msra.mxu0 %v23
    %58 = vmatprep.subr.mxu0 0.0
    %59 = vmatpush1.msra.mxu0 %v24
    %60 = vmatprep.subr.mxu0 0.0
    %61 = vmatpush1.msra.mxu0 %v25
    %62 = vmatprep.subr.mxu0 0.0
    %63 = vmatpush1.msra.mxu0 %v26
    %64 = vmatprep.subr.mxu0 0.0
    %65 = vmatpush1.msra.mxu0 %v27
    %66 = vmatprep.subr.mxu0 0.0
    %67 = vmatpush1.msra.mxu0 %v28
    %68 = vmatprep.subr.mxu0 0.0
    %69 = vmatpush1.msra.mxu0 %v29
    %70 = vmatprep.subr.mxu0 0.0
    %71 = vmatpush1.msra.mxu0 %v30
    %72 = vmatprep.subr.mxu0 0.0
    %73 = vmatpush1.msra.mxu0 0.0
    %74 = vmatprep.subr.mxu0 0.0
    %75 = vmatpush1.msra.mxu0 0.0
    %76 = vmatprep.subr.mxu0 0.0
    %77 = vmatpush1.msra.mxu0 0.0
    %78 = vmatprep.subr.mxu0 0.0
    %79 = vmatpush1.msra.mxu0 0.0
    %80 = vmatprep.subr.mxu0 0.0
    %81 = vmatpush1.msra.mxu0 0.0
    %82 = vmatprep.subr.mxu0 0.0
    %83 = vmatpush1.msra.mxu0 0.0
    %84 = vmatprep.subr.mxu0 0.0
    %85 = vmatpush1.msra.mxu0 0.0
    %86 = vmatprep.subr.mxu0 0.0
    %87 = vmatpush1.msra.mxu0 0.0
    %88 = vmatprep.subr.mxu0 0.0
    %89 = vmatpush1.msra.mxu0 0.0
    %90 = vmatprep.subr.mxu0 0.0
    %91 = vmatpush1.msra.mxu0 0.0
    %92 = vmatprep.subr.mxu0 0.0
    %93 = vmatpush1.msra.mxu0 0.0
    %94 = vmatprep.subr.mxu0 0.0
    %95 = vmatpush1.msra.mxu0 0.0
    %96 = vmatprep.subr.mxu0 0.0
    %97 = vmatpush1.msra.mxu0 0.0
    %98 = vmatprep.subr.mxu0 0.0
    %99 = vmatpush1.msra.mxu0 0.0
    %100 = vmatprep.subr.mxu0 0.0
    %101 = vmatpush1.msra.mxu0 0.0
    %102 = vmatprep.subr.mxu0 0.0
    %103 = vmatpush1.msra.mxu0 0.0
    %104 = vmatprep.mubr.f32.mxu0 0.0
    %105 = vmatmul.mubr.f32.gmra.mrb[0].mxu0 %v39
    %v106 = vpop.f32.mrb[0].mxu0
    %v107 = vadd.f32 0.0, %v106
    %v108 = vpop.f32.mrb[0].mxu0
    %109 = vdwg.mxu0
    %v110 = vmax.f32 %v107, 0.0
    %vm111 = vcmask 523264
    %v113 = vsel %vm111, %v110, 0
    %115 = vmatprep.subr.mxu0 0.0
    %116 = vmatpush1.msra.mxu0 %v31
    %117 = vmatprep.subr.mxu0 0.0
    %118 = vmatpush1.msra.mxu0 %v32
    %119 = vmatprep.subr.mxu0 0.0
    %120 = vmatpush1.msra.mxu0 %v33
    %121 = vmatprep.subr.mxu0 0.0
    %122 = vmatpush1.msra.mxu0 %v34
    %123 = vmatprep.subr.mxu0 0.0
    %124 = vmatpush1.msra.mxu0 %v35
    %125 = vmatprep.subr.mxu0 0.0
    %126 = vmatpush1.msra.mxu0 %v36
    %127 = vmatprep.subr.mxu0 0.0
    %128 = vmatpush1.msra.mxu0 %v37
    %129 = vmatprep.subr.mxu0 0.0
    %130 = vmatpush1.msra.mxu0 %v38
    %131 = vmatprep.subr.mxu0 0.0
    %132 = vmatpush1.msra.mxu0 0.0
    %133 = vmatprep.subr.mxu0 0.0
    %134 = vmatpush1.msra.mxu0 0.0
    %135 = vmatprep.subr.mxu0 0.0
    %136 = vmatpush1.msra.mxu0 0.0
    %137 = vmatprep.subr.mxu0 0.0
    %138 = vmatpush1.msra.mxu0 0.0
    %139 = vmatprep.subr.mxu0 0.0
    %140 = vmatpush1.msra.mxu0 0.0
    %141 = vmatprep.subr.mxu0 0.0
    %142 = vmatpush1.msra.mxu0 0.0
    %143 = vmatprep.subr.mxu0 0.0
    %144 = vmatpush1.msra.mxu0 0.0
    %145 = vmatprep.subr.mxu0 0.0
    %146 = vmatpush1.msra.mxu0 0.0
    %147 = vmatprep.subr.mxu0 0.0
    %148 = vmatpush1.msra.mxu0 0.0
    %149 = vmatprep.subr.mxu0 0.0
    %150 = vmatpush1.msra.mxu0 0.0
    %151 = vmatprep.subr.mxu0 0.0
    %152 = vmatpush1.msra.mxu0 0.0
    %153 = vmatprep.subr.mxu0 0.0
    %154 = vmatpush1.msra.mxu0 0.0
    %155 = vmatprep.subr.mxu0 0.0
    %156 = vmatpush1.msra.mxu0 0.0
    %157 = vmatprep.subr.mxu0 0.0
    %158 = vmatpush1.msra.mxu0 0.0
    %159 = vmatprep.subr.mxu0 0.0
    %160 = vmatpush1.msra.mxu0 0.0
    %161 = vmatprep.subr.mxu0 0.0
    %162 = vmatpush1.msra.mxu0 0.0
    %163 = vmatprep.subr.mxu0 0.0
    %164 = vmatpush1.msra.mxu0 0.0
    %165 = vmatprep.subr.mxu0 0.0
    %166 = vmatpush1.msra.mxu0 0.0
    %167 = vmatprep.subr.mxu0 0.0
    %168 = vmatpush1.msra.mxu0 0.0
    %169 = vmatprep.subr.mxu0 0.0
    %170 = vmatpush1.msra.mxu0 0.0
    %171 = vmatprep.subr.mxu0 0.0
    %172 = vmatpush1.msra.mxu0 0.0
    %173 = vmatprep.subr.mxu0 0.0
    %174 = vmatpush1.msra.mxu0 0.0
    %175 = vmatprep.subr.mxu0 0.0
    %176 = vmatpush1.msra.mxu0 0.0
    %177 = vmatprep.subr.mxu0 0.0
    %178 = vmatpush1.msra.mxu0 0.0
    %179 = vmatprep.mubr.f32.mxu0 0.0
    %180 = vmatmul.mubr.f32.gmra.mrb[0].mxu0 %v113
    %v181 = vpop.f32.mrb[0].mxu0
    %v182 = vadd.f32 %v39, %v181
    %v183 = vpop.f32.mrb[0].mxu0
    %184 = vdwg.mxu0
    %185 = vst [vmem:[#allocation2] sm:$0xff] %v182
    // Predicated region
    $region14: #{tpu_custom_call.1} parent=1 // pred_check
      _
    $region15: #{tpu_custom_call.1} parent=1 // pred_check_branch
      %187 = sbr.rel (0) target = $region17
    $region16: #{tpu_custom_call.1} parent=1 // pred_region
      %s189 = ssub.s32 128, 64
      %190 = vsyncadd [#allocation3], %s189
      %s191 = sshll.u32 [#allocation2], 4
      %s192 = int_to_ptr.vmem [resolvable:$true] %s191
      %197 = dma.vmem_to_hbm [thread:$0]  %s192, 64, %s3, [#allocation3], 64, 64, 4
    $region17: #{tpu_custom_call.1} parent=1 // pred_fallthru
      _
    // Predicated region
    $region18: #{tpu_custom_call.1} parent=1 // pred_check
      _
    $region19: #{tpu_custom_call.1} parent=1 // pred_check_branch
      %199 = sbr.rel (0) target = $region21
    $region20: #{tpu_custom_call.1} parent=1 // pred_region
      %200 = dma.done [#allocation3], 128
    $region21: #{tpu_custom_call.1} parent=1 // pred_fallthru
      _
    %201 = vsyncpa [#allocation3], 1

</llo_original>
